<compile_context>
chip_gen: v5e
topology: v5e:2x2
jax: 0.10.0
libtpu: 0.0.40
codegen_flags: <defaults>
</compile_context>

<pallas_src>
import functools

import jax
import jax.numpy as jnp
from jax import lax
from jax.experimental import pallas as pl
from jax.experimental.pallas import tpu as pltpu


def _shift_lanes(x, s):
    """y[:, p] = x[:, p + s] if 0 <= p + s < P else 0 (zero-filled shift along lanes)."""
    if s == 0:
        return x
    c, p = x.shape
    pad = jnp.zeros((c, abs(s)), x.dtype)
    if s > 0:
        return jnp.concatenate([x[:, s:], pad], axis=1)
    return jnp.concatenate([pad, x[:, :p + s]], axis=1)


def _conv3x3_im2col(x, w_mat, col_idx, img_w):
    """3x3 'same' convolution in channel-major flattened layout.

    x      : (Cin, H*W) float32
    w_mat  : (Cout, 9*Cin) bfloat16, rows ordered (ky, kx, ci)
    col_idx: (1, H*W) int32 pixel column index (p % W)
    Returns (Cout, H*W) float32 (f32 accumulation on the MXU).
    """
    zeros = jnp.zeros_like(x)
    # Pre-mask the input columns that would wrap across a row boundary for dx = +/-1;
    # the top/bottom (dy) halo is handled by the zero fill of _shift_lanes.
    x_by_dx = {
        -1: jnp.where(col_idx <= img_w - 2, x, zeros),
        0: x,
        1: jnp.where(col_idx >= 1, x, zeros),
    }
    taps = []
    for dy in (-1, 0, 1):
        for dx in (-1, 0, 1):
            shifted = _shift_lanes(x_by_dx[dx], dy * img_w + dx)
            taps.append(shifted.astype(jnp.bfloat16))
    patches = jnp.concatenate(taps, axis=0)                      # (9*Cin, H*W) bf16
    return jnp.dot(w_mat, patches, preferred_element_type=jnp.float32)


def _make_kernel(img_w):
    def kernel(x_ref, w1_ref, w2_ref, bias_ref, out_ref):
        """x_ref: (1,Cin,HW) f32 | w1_ref: (Cin,9Cin) bf16 (BN scale folded) |
        w2_ref: (Cout,9Cin) bf16 | bias_ref: (Cin,1) f32 | out_ref: (1,Cout,HW) f32."""
        hw = x_ref.shape[2]
        col_idx = lax.broadcasted_iota(jnp.int32, (1, hw), 1) % img_w

        x = x_ref[0]                                             # (Cin, HW) f32
        acc1 = _conv3x3_im2col(x, w1_ref[...], col_idx, img_w)   # conv1 (scale folded)
        h = jnp.maximum(acc1 + bias_ref[...], 0.0)               # BN bias + ReLU (lane-dense)
        out = _conv3x3_im2col(h, w2_ref[...], col_idx, img_w)    # conv2
        out_ref[0] = out.astype(out_ref.dtype)                   # lane-dense (HW-wide) store
    return kernel


def _weights_to_im2col(w_oihw):
    o, i, kh, kw = w_oihw.shape
    # row index of the result:  o ;  column index: ky*3*I + kx*I + i
    return jnp.transpose(w_oihw, (0, 2, 3, 1)).reshape(o, kh * kw * i)


@functools.partial(jax.jit, static_argnames=("img_w",))
def _output_cv_block_flat(x_flat, w1_mat, w2_mat, bias, *, img_w):
    n, cin, hw = x_flat.shape
    cout = w2_mat.shape[0]
    return pl.pallas_call(
        _make_kernel(img_w),
        out_shape=jax.ShapeDtypeStruct((n, cout, hw), jnp.float32),
        grid_spec=pltpu.PrefetchScalarGridSpec(
            num_scalar_prefetch=0,
            grid=(n,),
            in_specs=[
                pl.BlockSpec((1, cin, hw), lambda b: (b, 0, 0)),
                pl.BlockSpec((cin, 9 * cin), lambda b: (0, 0)),
                pl.BlockSpec((cout, 9 * cin), lambda b: (0, 0)),
                pl.BlockSpec((cin, 1), lambda b: (0, 0)),
            ],
            out_specs=pl.BlockSpec((1, cout, hw), lambda b: (b, 0, 0)),
        ),
        compiler_params=pltpu.CompilerParams(
            dimension_semantics=("parallel",)),
    )(x_flat, w1_mat, w2_mat, bias)


def output_cv_block_nchw(x_nchw, w1_oihw, w2_oihw, gamma, beta, run_mean,
                         run_var, eps=1e-5):
    """NCHW in / NCHW out, matching the PyTorch module (eval-mode BatchNorm)."""
    n, cin, h, w = x_nchw.shape
    cout = w2_oihw.shape[0]

    scale = gamma / jnp.sqrt(run_var + eps)                      # (Cin,)
    bias = beta - run_mean * scale                               # (Cin,)

    # Fold the BN scale into conv1's output channels (exact), then cast weights to bf16.
    w1_mat = _weights_to_im2col(w1_oihw.astype(jnp.float32)) * scale[:, None]
    w2_mat = _weights_to_im2col(w2_oihw.astype(jnp.float32))

    out_flat = _output_cv_block_flat(
        x_nchw.astype(jnp.float32).reshape(n, cin, h * w),       # pure reshape, no pad
        w1_mat.astype(jnp.bfloat16),
        w2_mat.astype(jnp.bfloat16),
        bias.reshape(cin, 1).astype(jnp.float32),
        img_w=w)
    return out_flat.reshape(n, cout, h, w)


def _reference_nchw(x, w1, w2, gamma, beta, run_mean, run_var, eps=1e-5):
    """Pure-JAX f32 reference mirroring the PyTorch forward (eval-mode BN)."""
    dn = ("NCHW", "OIHW", "NCHW")
    y = lax.conv_general_dilated(x, w1, (1, 1), ((1, 1), (1, 1)),
                                 dimension_numbers=dn)
    y = (y - run_mean[None, :, None, None]) / jnp.sqrt(
        run_var[None, :, None, None] + eps)
    y = y * gamma[None, :, None, None] + beta[None, :, None, None]
    y = jnp.maximum(y, 0.0)
    y = lax.conv_general_dilated(y, w2, (1, 1), ((1, 1), (1, 1)),
                                 dimension_numbers=dn)
    return y


if __name__ == "__main__":
    key = jax.random.PRNGKey(0)
    N, Cin, Cout, H, W = 2, 16, 8, 16, 16

    k = jax.random.split(key, 7)
    x = jax.random.normal(k[0], (N, Cin, H, W), jnp.float32)
    w1 = 0.1 * jax.random.normal(k[1], (Cin, Cin, 3, 3), jnp.float32)
    w2 = 0.1 * jax.random.normal(k[2], (Cout, Cin, 3, 3), jnp.float32)
    gamma = 1.0 + 0.1 * jax.random.normal(k[3], (Cin,), jnp.float32)
    beta = 0.1 * jax.random.normal(k[4], (Cin,), jnp.float32)
    run_mean = 0.1 * jax.random.normal(k[5], (Cin,), jnp.float32)
    run_var = jnp.abs(jax.random.normal(k[6], (Cin,), jnp.float32)) + 0.5

    out = output_cv_block_nchw(x, w1, w2, gamma, beta, run_mean, run_var)
    out = jax.block_until_ready(out)

    ref = _reference_nchw(x, w1, w2, gamma, beta, run_mean, run_var)
    ref = jax.block_until_ready(ref)

    assert out.shape == (N, Cout, H, W), out.shape
    # bf16 matmul operands (f32 accumulation) vs. the f32 XLA reference -> widened tolerance.
    max_err = float(jnp.max(jnp.abs(out - ref)))
    assert jnp.allclose(out, ref, rtol=5e-2, atol=5e-2), max_err

    print("KERNEL_OK")
</pallas_src>

<mosaic_0001>
module attributes {stable_mosaic.version = 11 : i64} {
  func.func @kernel(%arg0: i32, %arg1: memref<1x16x256xf32, #tpu.memory_space<vmem>>, %arg2: memref<16x144xbf16, #tpu.memory_space<vmem>>, %arg3: memref<8x144xbf16, #tpu.memory_space<vmem>>, %arg4: memref<16x1xf32, #tpu.memory_space<vmem>>, %arg5: memref<1x8x256xf32, #tpu.memory_space<vmem>>) attributes {dimension_semantics = [#tpu.dimension_semantics<parallel>], iteration_bounds = array<i64: 2>, scalar_prefetch = 0 : i64, scratch_operands = 0 : i64, tpu.core_type = #tpu.core_type<tc>, window_params = [{transform_indices = @transform_0, window_bounds = array<i64: 1, 16, 256>}, {pipeline_mode = #tpu.pipeline_mode<synchronous>, transform_indices = @transform_1, window_bounds = array<i64: 16, 144>}, {pipeline_mode = #tpu.pipeline_mode<synchronous>, transform_indices = @transform_2, window_bounds = array<i64: 8, 144>}, {pipeline_mode = #tpu.pipeline_mode<synchronous>, transform_indices = @transform_3, window_bounds = array<i64: 16, 1>}, {transform_indices = @transform_4, window_bounds = array<i64: 1, 8, 256>}]} {
    %0 = tpu.iota {dimensions = array<i32: 1>} : vector<1x256xi32>
    %c16_i32 = arith.constant 16 : i32
    %c0_i32 = arith.constant 0 : i32
    %1 = arith.cmpi eq, %c16_i32, %c0_i32 : i32
    %c1_i32 = arith.constant 1 : i32
    %2 = arith.select %1, %c1_i32, %c16_i32 : i32
    %3 = vector.broadcast %2 : i32 to vector<1x256xi32>
    %4 = arith.remsi %0, %3 : vector<1x256xi32>
    %c0_i32_0 = arith.constant 0 : i32
    %5 = vector.broadcast %c0_i32_0 : i32 to vector<1x256xi32>
    %6 = arith.cmpi ne, %4, %5 : vector<1x256xi32>
    %c0_i32_1 = arith.constant 0 : i32
    %7 = vector.broadcast %c0_i32_1 : i32 to vector<1x256xi32>
    %8 = arith.cmpi slt, %4, %7 : vector<1x256xi32>
    %c0_i32_2 = arith.constant 0 : i32
    %9 = arith.cmpi slt, %2, %c0_i32_2 : i32
    %10 = vector.broadcast %9 : i1 to vector<1x256xi1>
    %11 = vector.broadcast %10 : vector<1x256xi1> to vector<1x256xi1>
    %12 = arith.xori %8, %11 : vector<1x256xi1>
    %13 = arith.andi %12, %6 : vector<1x256xi1>
    %14 = vector.broadcast %2 : i32 to vector<1x256xi32>
    %15 = arith.addi %4, %14 : vector<1x256xi32>
    %16 = arith.select %13, %15, %4 : vector<1x256xi1>, vector<1x256xi32>
    %c0 = arith.constant 0 : index
    %c0_3 = arith.constant 0 : index
    %c0_4 = arith.constant 0 : index
    %17 = vector.load %arg1[%c0, %c0_3, %c0_4] : memref<1x16x256xf32, #tpu.memory_space<vmem>>, vector<1x16x256xf32>
    %18 = vector.shape_cast %17 : vector<1x16x256xf32> to vector<16x256xf32>
    %c0_5 = arith.constant 0 : index
    %c0_6 = arith.constant 0 : index
    %19 = vector.load %arg2[%c0_5, %c0_6] : memref<16x144xbf16, #tpu.memory_space<vmem>>, vector<16x144xbf16>
    %cst = arith.constant 0.000000e+00 : f32
    %20 = vector.broadcast %cst : f32 to vector<16x256xf32>
    %c14_i32 = arith.constant 14 : i32
    %21 = vector.broadcast %c14_i32 : i32 to vector<1x256xi32>
    %22 = arith.cmpi sle, %16, %21 : vector<1x256xi32>
    %23 = vector.shape_cast %22 : vector<1x256xi1> to vector<1x256xi1>
    %24 = vector.broadcast %23 : vector<1x256xi1> to vector<16x256xi1>
    %25 = arith.select %24, %18, %20 : vector<16x256xi1>, vector<16x256xf32>
    %c1_i32_7 = arith.constant 1 : i32
    %26 = vector.broadcast %c1_i32_7 : i32 to vector<1x256xi32>
    %27 = arith.cmpi sge, %16, %26 : vector<1x256xi32>
    %28 = vector.shape_cast %27 : vector<1x256xi1> to vector<1x256xi1>
    %29 = vector.broadcast %28 : vector<1x256xi1> to vector<16x256xi1>
    %30 = arith.select %29, %18, %20 : vector<16x256xi1>, vector<16x256xf32>
    %cst_8 = arith.constant 0.000000e+00 : f32
    %31 = vector.broadcast %cst_8 : f32 to vector<16x17xf32>
    %32 = vector.extract_strided_slice %25 {offsets = [0, 0], sizes = [16, 239], strides = [1, 1]} : vector<16x256xf32> to vector<16x239xf32>
    %33 = tpu.concatenate %31, %32 in 1 : vector<16x17xf32>, vector<16x239xf32> -> vector<16x256xf32>
    %34 = arith.truncf %33 : vector<16x256xf32> to vector<16x256xbf16>
    %cst_9 = arith.constant 0.000000e+00 : f32
    %35 = vector.broadcast %cst_9 : f32 to vector<16x16xf32>
    %36 = vector.extract_strided_slice %18 {offsets = [0, 0], sizes = [16, 240], strides = [1, 1]} : vector<16x256xf32> to vector<16x240xf32>
    %37 = tpu.concatenate %35, %36 in 1 : vector<16x16xf32>, vector<16x240xf32> -> vector<16x256xf32>
    %38 = arith.truncf %37 : vector<16x256xf32> to vector<16x256xbf16>
    %cst_10 = arith.constant 0.000000e+00 : f32
    %39 = vector.broadcast %cst_10 : f32 to vector<16x15xf32>
    %40 = vector.extract_strided_slice %30 {offsets = [0, 0], sizes = [16, 241], strides = [1, 1]} : vector<16x256xf32> to vector<16x241xf32>
    %41 = tpu.concatenate %39, %40 in 1 : vector<16x15xf32>, vector<16x241xf32> -> vector<16x256xf32>
    %42 = arith.truncf %41 : vector<16x256xf32> to vector<16x256xbf16>
    %cst_11 = arith.constant 0.000000e+00 : f32
    %43 = vector.broadcast %cst_11 : f32 to vector<16x1xf32>
    %44 = vector.extract_strided_slice %25 {offsets = [0, 0], sizes = [16, 255], strides = [1, 1]} : vector<16x256xf32> to vector<16x255xf32>
    %45 = tpu.concatenate %43, %44 in 1 : vector<16x1xf32>, vector<16x255xf32> -> vector<16x256xf32>
    %46 = arith.truncf %45 : vector<16x256xf32> to vector<16x256xbf16>
    %47 = arith.truncf %18 : vector<16x256xf32> to vector<16x256xbf16>
    %cst_12 = arith.constant 0.000000e+00 : f32
    %48 = vector.broadcast %cst_12 : f32 to vector<16x1xf32>
    %49 = vector.extract_strided_slice %30 {offsets = [0, 1], sizes = [16, 255], strides = [1, 1]} : vector<16x256xf32> to vector<16x255xf32>
    %50 = tpu.concatenate %49, %48 in 1 : vector<16x255xf32>, vector<16x1xf32> -> vector<16x256xf32>
    %51 = arith.truncf %50 : vector<16x256xf32> to vector<16x256xbf16>
    %cst_13 = arith.constant 0.000000e+00 : f32
    %52 = vector.broadcast %cst_13 : f32 to vector<16x15xf32>
    %53 = vector.extract_strided_slice %25 {offsets = [0, 15], sizes = [16, 241], strides = [1, 1]} : vector<16x256xf32> to vector<16x241xf32>
    %54 = tpu.concatenate %53, %52 in 1 : vector<16x241xf32>, vector<16x15xf32> -> vector<16x256xf32>
    %55 = arith.truncf %54 : vector<16x256xf32> to vector<16x256xbf16>
    %cst_14 = arith.constant 0.000000e+00 : f32
    %56 = vector.broadcast %cst_14 : f32 to vector<16x16xf32>
    %57 = vector.extract_strided_slice %18 {offsets = [0, 16], sizes = [16, 240], strides = [1, 1]} : vector<16x256xf32> to vector<16x240xf32>
    %58 = tpu.concatenate %57, %56 in 1 : vector<16x240xf32>, vector<16x16xf32> -> vector<16x256xf32>
    %59 = arith.truncf %58 : vector<16x256xf32> to vector<16x256xbf16>
    %cst_15 = arith.constant 0.000000e+00 : f32
    %60 = vector.broadcast %cst_15 : f32 to vector<16x17xf32>
    %61 = vector.extract_strided_slice %30 {offsets = [0, 17], sizes = [16, 239], strides = [1, 1]} : vector<16x256xf32> to vector<16x239xf32>
    %62 = tpu.concatenate %61, %60 in 1 : vector<16x239xf32>, vector<16x17xf32> -> vector<16x256xf32>
    %63 = arith.truncf %62 : vector<16x256xf32> to vector<16x256xbf16>
    %64 = tpu.concatenate %34, %38, %42, %46, %47, %51, %55, %59, %63 in 0 : vector<16x256xbf16>, vector<16x256xbf16>, vector<16x256xbf16>, vector<16x256xbf16>, vector<16x256xbf16>, vector<16x256xbf16>, vector<16x256xbf16>, vector<16x256xbf16>, vector<16x256xbf16> -> vector<144x256xbf16>
    %cst_16 = arith.constant dense<0.000000e+00> : vector<16x256xf32>
    %65 = tpu.matmul %19, %64, %cst_16 {dimension_numbers = #tpu.dot_dimension_numbers<[1], [0], [0], [1], [0, 0, 1, 1], [], []>} : vector<16x144xbf16>, vector<144x256xbf16>, vector<16x256xf32> -> vector<16x256xf32>
    %c0_17 = arith.constant 0 : index
    %c0_18 = arith.constant 0 : index
    %66 = vector.load %arg4[%c0_17, %c0_18] : memref<16x1xf32, #tpu.memory_space<vmem>>, vector<16x1xf32>
    %67 = vector.broadcast %66 : vector<16x1xf32> to vector<16x256xf32>
    %68 = arith.addf %65, %67 : vector<16x256xf32>
    %cst_19 = arith.constant 0.000000e+00 : f32
    %69 = vector.broadcast %cst_19 : f32 to vector<16x256xf32>
    %70 = arith.maximumf %68, %69 : vector<16x256xf32>
    %c0_20 = arith.constant 0 : index
    %c0_21 = arith.constant 0 : index
    %71 = vector.load %arg3[%c0_20, %c0_21] : memref<8x144xbf16, #tpu.memory_space<vmem>>, vector<8x144xbf16>
    %cst_22 = arith.constant 0.000000e+00 : f32
    %72 = vector.broadcast %cst_22 : f32 to vector<16x256xf32>
    %c14_i32_23 = arith.constant 14 : i32
    %73 = vector.broadcast %c14_i32_23 : i32 to vector<1x256xi32>
    %74 = arith.cmpi sle, %16, %73 : vector<1x256xi32>
    %75 = vector.shape_cast %74 : vector<1x256xi1> to vector<1x256xi1>
    %76 = vector.broadcast %75 : vector<1x256xi1> to vector<16x256xi1>
    %77 = arith.select %76, %70, %72 : vector<16x256xi1>, vector<16x256xf32>
    %c1_i32_24 = arith.constant 1 : i32
    %78 = vector.broadcast %c1_i32_24 : i32 to vector<1x256xi32>
    %79 = arith.cmpi sge, %16, %78 : vector<1x256xi32>
    %80 = vector.shape_cast %79 : vector<1x256xi1> to vector<1x256xi1>
    %81 = vector.broadcast %80 : vector<1x256xi1> to vector<16x256xi1>
    %82 = arith.select %81, %70, %72 : vector<16x256xi1>, vector<16x256xf32>
    %cst_25 = arith.constant 0.000000e+00 : f32
    %83 = vector.broadcast %cst_25 : f32 to vector<16x17xf32>
    %84 = vector.extract_strided_slice %77 {offsets = [0, 0], sizes = [16, 239], strides = [1, 1]} : vector<16x256xf32> to vector<16x239xf32>
    %85 = tpu.concatenate %83, %84 in 1 : vector<16x17xf32>, vector<16x239xf32> -> vector<16x256xf32>
    %86 = arith.truncf %85 : vector<16x256xf32> to vector<16x256xbf16>
    %cst_26 = arith.constant 0.000000e+00 : f32
    %87 = vector.broadcast %cst_26 : f32 to vector<16x16xf32>
    %88 = vector.extract_strided_slice %70 {offsets = [0, 0], sizes = [16, 240], strides = [1, 1]} : vector<16x256xf32> to vector<16x240xf32>
    %89 = tpu.concatenate %87, %88 in 1 : vector<16x16xf32>, vector<16x240xf32> -> vector<16x256xf32>
    %90 = arith.truncf %89 : vector<16x256xf32> to vector<16x256xbf16>
    %cst_27 = arith.constant 0.000000e+00 : f32
    %91 = vector.broadcast %cst_27 : f32 to vector<16x15xf32>
    %92 = vector.extract_strided_slice %82 {offsets = [0, 0], sizes = [16, 241], strides = [1, 1]} : vector<16x256xf32> to vector<16x241xf32>
    %93 = tpu.concatenate %91, %92 in 1 : vector<16x15xf32>, vector<16x241xf32> -> vector<16x256xf32>
    %94 = arith.truncf %93 : vector<16x256xf32> to vector<16x256xbf16>
    %cst_28 = arith.constant 0.000000e+00 : f32
    %95 = vector.broadcast %cst_28 : f32 to vector<16x1xf32>
    %96 = vector.extract_strided_slice %77 {offsets = [0, 0], sizes = [16, 255], strides = [1, 1]} : vector<16x256xf32> to vector<16x255xf32>
    %97 = tpu.concatenate %95, %96 in 1 : vector<16x1xf32>, vector<16x255xf32> -> vector<16x256xf32>
    %98 = arith.truncf %97 : vector<16x256xf32> to vector<16x256xbf16>
    %99 = arith.truncf %70 : vector<16x256xf32> to vector<16x256xbf16>
    %cst_29 = arith.constant 0.000000e+00 : f32
    %100 = vector.broadcast %cst_29 : f32 to vector<16x1xf32>
    %101 = vector.extract_strided_slice %82 {offsets = [0, 1], sizes = [16, 255], strides = [1, 1]} : vector<16x256xf32> to vector<16x255xf32>
    %102 = tpu.concatenate %101, %100 in 1 : vector<16x255xf32>, vector<16x1xf32> -> vector<16x256xf32>
    %103 = arith.truncf %102 : vector<16x256xf32> to vector<16x256xbf16>
    %cst_30 = arith.constant 0.000000e+00 : f32
    %104 = vector.broadcast %cst_30 : f32 to vector<16x15xf32>
    %105 = vector.extract_strided_slice %77 {offsets = [0, 15], sizes = [16, 241], strides = [1, 1]} : vector<16x256xf32> to vector<16x241xf32>
    %106 = tpu.concatenate %105, %104 in 1 : vector<16x241xf32>, vector<16x15xf32> -> vector<16x256xf32>
    %107 = arith.truncf %106 : vector<16x256xf32> to vector<16x256xbf16>
    %cst_31 = arith.constant 0.000000e+00 : f32
    %108 = vector.broadcast %cst_31 : f32 to vector<16x16xf32>
    %109 = vector.extract_strided_slice %70 {offsets = [0, 16], sizes = [16, 240], strides = [1, 1]} : vector<16x256xf32> to vector<16x240xf32>
    %110 = tpu.concatenate %109, %108 in 1 : vector<16x240xf32>, vector<16x16xf32> -> vector<16x256xf32>
    %111 = arith.truncf %110 : vector<16x256xf32> to vector<16x256xbf16>
    %cst_32 = arith.constant 0.000000e+00 : f32
    %112 = vector.broadcast %cst_32 : f32 to vector<16x17xf32>
    %113 = vector.extract_strided_slice %82 {offsets = [0, 17], sizes = [16, 239], strides = [1, 1]} : vector<16x256xf32> to vector<16x239xf32>
    %114 = tpu.concatenate %113, %112 in 1 : vector<16x239xf32>, vector<16x17xf32> -> vector<16x256xf32>
    %115 = arith.truncf %114 : vector<16x256xf32> to vector<16x256xbf16>
    %116 = tpu.concatenate %86, %90, %94, %98, %99, %103, %107, %111, %115 in 0 : vector<16x256xbf16>, vector<16x256xbf16>, vector<16x256xbf16>, vector<16x256xbf16>, vector<16x256xbf16>, vector<16x256xbf16>, vector<16x256xbf16>, vector<16x256xbf16>, vector<16x256xbf16> -> vector<144x256xbf16>
    %cst_33 = arith.constant dense<0.000000e+00> : vector<8x256xf32>
    %117 = tpu.matmul %71, %116, %cst_33 {dimension_numbers = #tpu.dot_dimension_numbers<[1], [0], [0], [1], [0, 0, 1, 1], [], []>} : vector<8x144xbf16>, vector<144x256xbf16>, vector<8x256xf32> -> vector<8x256xf32>
    %c0_34 = arith.constant 0 : index
    %c0_35 = arith.constant 0 : index
    %c0_36 = arith.constant 0 : index
    %118 = vector.load %arg5[%c0_34, %c0_35, %c0_36] : memref<1x8x256xf32, #tpu.memory_space<vmem>>, vector<1x8x256xf32>
    %119 = vector.shape_cast %118 : vector<1x8x256xf32> to vector<8x256xf32>
    %120 = vector.shape_cast %117 : vector<8x256xf32> to vector<1x8x256xf32>
    tpu.vector_store %arg5[%c0_34, %c0_35, %c0_36], %120 {strides = array<i32>} : memref<1x8x256xf32, #tpu.memory_space<vmem>>, vector<1x8x256xf32>,
    return
  }
  func.func @transform_0(%arg0: i32) -> (i32, i32, i32) {
    %c0_i32 = arith.constant 0 : i32
    %c0_i32_0 = arith.constant 0 : i32
    %c0_i32_1 = arith.constant 0 : i32
    return %arg0, %c0_i32, %c0_i32_0 : i32, i32, i32
  }
  func.func @transform_1(%arg0: i32) -> (i32, i32) {
    %c0_i32 = arith.constant 0 : i32
    %c0_i32_0 = arith.constant 0 : i32
    %c0_i32_1 = arith.constant 0 : i32
    return %c0_i32, %c0_i32_0 : i32, i32
  }
  func.func @transform_2(%arg0: i32) -> (i32, i32) {
    %c0_i32 = arith.constant 0 : i32
    %c0_i32_0 = arith.constant 0 : i32
    %c0_i32_1 = arith.constant 0 : i32
    return %c0_i32, %c0_i32_0 : i32, i32
  }
  func.func @transform_3(%arg0: i32) -> (i32, i32) {
    %c0_i32 = arith.constant 0 : i32
    %c0_i32_0 = arith.constant 0 : i32
    %c0_i32_1 = arith.constant 0 : i32
    return %c0_i32, %c0_i32_0 : i32, i32
  }
  func.func @transform_4(%arg0: i32) -> (i32, i32, i32) {
    %c0_i32 = arith.constant 0 : i32
    %c0_i32_0 = arith.constant 0 : i32
    %c0_i32_1 = arith.constant 0 : i32
    return %arg0, %c0_i32, %c0_i32_0 : i32, i32, i32
  }
}

</mosaic_0001>

<llo_original>
// kernel: _output_cv_block_flat.1
$region0: #{_output_cv_block_flat.1}
  #allocation0 [shape = 'u32[]', space=smem, size = 0x4, offset = 0x4, fixed_abs, tag = 'smem constant byte address 0x4 - core index']
  #allocation1 [shape = 'u32[72,128]{1,0:T(1,128)}', space=vmem, size = 0x9000, scoped, tag = 'internal scratch']
  %s0 = inlined_call_operand.hbm [shape: f32[2,16,256], index: 0, kind: input, shape index: {}]
  %s1 = inlined_call_operand.vmem [shape: bf16[16,144], index: 1, kind: input, shape index: {}]
  %s2 = inlined_call_operand.hbm [shape: bf16[8,144], index: 2, kind: input, shape index: {}]
  %s3 = inlined_call_operand.vmem [shape: f32[16,1], index: 3, kind: input, shape index: {}]
  %s4 = inlined_call_operand.hbm [shape: f32[2,8,256], index: 4, kind: output, shape index: {}]
  %s5 = sld [smem:[#allocation0]]
  $region57: #{_output_cv_block_flat.1} parent=0
    _
  %s7 = ssub.s32 1, %s5
  %s8 = scalar_select 0, %s7, %s5
  $region1: #{_output_cv_block_flat.1} parent=0
    #allocation2 [shape = 'u8[32768]{0}', space=vmem, size = 0x8000, scoped, tag = 'input window, operand 0']
    #allocation3 [shape = 's32[2]{0}', space=sflag, size = 0x8, scoped, tag = 'scoped memory for _output_cv_block_flat.1']
    #allocation4 [shape = 's32[2]{0}', space=sflag, size = 0x8, scoped, tag = 'scoped memory for _output_cv_block_flat.1']
    #allocation5 [shape = 'u8[4096]{0}', space=vmem, size = 0x1000, scoped, tag = 'input window, operand 2, single buffered']
    #allocation6 [shape = 's32[1]{0}', space=sflag, size = 0x4, scoped, tag = 'scoped memory for _output_cv_block_flat.1']
    #allocation7 [shape = 'u8[16384]{0}', space=vmem, size = 0x4000, scoped, tag = 'output window, operand 0']
    %9 = vsyncpa [#allocation3], 0
    %s10 = scalar_lea.sflag [#allocation3], 1
    %11 = vsyncpa %s10, 0
    %12 = vsyncpa [#allocation6], 0
    %13 = vsyncpa [#allocation4], 0
    %s14 = scalar_lea.sflag [#allocation4], 1
    %15 = vsyncpa %s14, 0
    loop: start=0, step=1, limit=4
    $region2: #{_output_cv_block_flat.1} parent=1 // loop_pre_header
      _
    $region3: #{_output_cv_block_flat.1} parent=1 // loop_header
      %s17 = sphi 0, %s21
      %p18 = scmp.ge.s32.totalorder %s17, 4
      %s27 = sphi 0, %s29
      %s30 = sphi 0, %s27
      %s31 = sphi 0, %s30
      %s47 = sphi 0, %s31
      %s51 = sphi 0, %s51
      %s53 = sphi 0, %s51
      %s54 = sphi 0, %s53
      %s68 = sphi 0, %s54
      %s72 = sphi 0, %s72
      %s74 = sphi 0, %s72
      %s75 = sphi 0, %s74
      %s89 = sphi 0, %s75
      %s93 = sphi 0, %s93
      %s95 = sphi 0, %s93
      %s96 = sphi 0, %s95
      %s110 = sphi 0, %s96
      %s116 = sphi 0, %s118
      %s119 = sphi 0, %s116
      %s120 = sphi 0, %s119
      %s136 = sphi 0, %s120
    $region4: #{_output_cv_block_flat.1} parent=1 // loop_header_branch
      %20 = sbr.rel (%p18) target = $region8
    $region5: #{_output_cv_block_flat.1} parent=1 // loop_body
      %s22 = ssub.s32 %s17, 1
      %s23 = ssub.s32 %s17, 2
      %s24 = sadd.s32 %s17, 1
      %s25 = ssub.s32 %s17, %s24
      %p26 = scmp.eq.s32.totalorder %s25, 0
      %s28 = sadd.s32 %s27, 1
      %s29 = scalar_select %p26, %s27, %s28
      %p32 = pneg %p26
      %p33 = scmp.eq.s32.totalorder %s17, 1
      %p34 = por %p32, %p33
      %p35 = scmp.ne.s32.totalorder %s27, %s30
      %p36 = scmp.eq.s32.totalorder %s17, 0
      %p37 = por %p35, %p36
      %p38 = scmp.ne.s32.totalorder %s27, %s30
      %p39 = scmp.eq.s32.totalorder %s22, 1
      %p40 = por %p38, %p39
      %p41 = scmp.ne.s32.totalorder %s30, %s31
      %p42 = scmp.eq.s32.totalorder %s22, 0
      %p43 = por %p41, %p42
      %p44 = scmp.ne.s32.totalorder %s30, %s31
      %p45 = scmp.eq.s32.totalorder %s23, 1
      %p46 = por %p44, %p45
      %p48 = scmp.ne.s32.totalorder %s31, %s47
      %p49 = scmp.eq.s32.totalorder %s23, 0
      %p50 = por %p48, %p49
      %s52 = sadd.s32 %s51, 1
      %p55 = scmp.eq.s32.totalorder %s17, 1
      %p56 = scmp.ne.s32.totalorder %s51, %s53
      %p57 = scmp.eq.s32.totalorder %s17, 0
      %p58 = por %p56, %p57
      %p59 = scmp.ne.s32.totalorder %s51, %s53
      %p60 = scmp.eq.s32.totalorder %s22, 1
      %p61 = por %p59, %p60
      %p62 = scmp.ne.s32.totalorder %s53, %s54
      %p63 = scmp.eq.s32.totalorder %s22, 0
      %p64 = por %p62, %p63
      %p65 = scmp.ne.s32.totalorder %s53, %s54
      %p66 = scmp.eq.s32.totalorder %s23, 1
      %p67 = por %p65, %p66
      %p69 = scmp.ne.s32.totalorder %s54, %s68
      %p70 = scmp.eq.s32.totalorder %s23, 0
      %p71 = por %p69, %p70
      %s73 = sadd.s32 %s72, 1
      %p76 = scmp.eq.s32.totalorder %s17, 1
      %p77 = scmp.ne.s32.totalorder %s72, %s74
      %p78 = scmp.eq.s32.totalorder %s17, 0
      %p79 = por %p77, %p78
      %p80 = scmp.ne.s32.totalorder %s72, %s74
      %p81 = scmp.eq.s32.totalorder %s22, 1
      %p82 = por %p80, %p81
      %p83 = scmp.ne.s32.totalorder %s74, %s75
      %p84 = scmp.eq.s32.totalorder %s22, 0
      %p85 = por %p83, %p84
      %p86 = scmp.ne.s32.totalorder %s74, %s75
      %p87 = scmp.eq.s32.totalorder %s23, 1
      %p88 = por %p86, %p87
      %p90 = scmp.ne.s32.totalorder %s75, %s89
      %p91 = scmp.eq.s32.totalorder %s23, 0
      %p92 = por %p90, %p91
      %s94 = sadd.s32 %s93, 1
      %p97 = scmp.eq.s32.totalorder %s17, 1
      %p98 = scmp.ne.s32.totalorder %s93, %s95
      %p99 = scmp.eq.s32.totalorder %s17, 0
      %p100 = por %p98, %p99
      %p101 = scmp.ne.s32.totalorder %s93, %s95
      %p102 = scmp.eq.s32.totalorder %s22, 1
      %p103 = por %p101, %p102
      %p104 = scmp.ne.s32.totalorder %s95, %s96
      %p105 = scmp.eq.s32.totalorder %s22, 0
      %p106 = por %p104, %p105
      %p107 = scmp.ne.s32.totalorder %s95, %s96
      %p108 = scmp.eq.s32.totalorder %s23, 1
      %p109 = por %p107, %p108
      %p111 = scmp.ne.s32.totalorder %s96, %s110
      %p112 = scmp.eq.s32.totalorder %s23, 0
      %p113 = por %p111, %p112
      %s114 = ssub.s32 %s17, %s24
      %p115 = scmp.eq.s32.totalorder %s114, 0
      %s117 = sadd.s32 %s116, 1
      %s118 = scalar_select %p115, %s116, %s117
      %p121 = pneg %p115
      %p122 = scmp.eq.s32.totalorder %s17, 1
      %p123 = por %p121, %p122
      %p124 = scmp.ne.s32.totalorder %s116, %s119
      %p125 = scmp.eq.s32.totalorder %s17, 0
      %p126 = por %p124, %p125
      %p127 = scmp.ne.s32.totalorder %s116, %s119
      %p128 = scmp.eq.s32.totalorder %s22, 1
      %p129 = por %p127, %p128
      %p130 = scmp.ne.s32.totalorder %s119, %s120
      %p131 = scmp.eq.s32.totalorder %s22, 0
      %p132 = por %p130, %p131
      %p133 = scmp.ne.s32.totalorder %s119, %s120
      %p134 = scmp.eq.s32.totalorder %s23, 1
      %p135 = por %p133, %p134
      %p137 = scmp.ne.s32.totalorder %s120, %s136
      %p138 = scmp.eq.s32.totalorder %s23, 0
      %p139 = por %p137, %p138
      %p140 = scmp.le.s32.totalorder 1, %s17
      %p141 = scmp.lt.s32.totalorder %s17, 3
      %p142 = pnand %p140, %p141
      %p143 = pneg %p142
      // Predicated region
      $region9: #{_output_cv_block_flat.1} parent=5 // pred_check
        _
      $region10: #{_output_cv_block_flat.1} parent=5 // pred_check_branch
        %145 = sbr.rel (%p142) target = $region12
      $region11: #{_output_cv_block_flat.1} parent=5 // pred_region
        %s146 = ssub.s32 %s17, 1
        // Predicated region
        $region13: #{_output_cv_block_flat.1} parent=11 // pred_check
          %p147 = pneg %p64
        $region14: #{_output_cv_block_flat.1} parent=11 // pred_check_branch
          %149 = sbr.rel (%p147) target = $region16
        $region15: #{_output_cv_block_flat.1} parent=11 // pred_region
          _
        $region16: #{_output_cv_block_flat.1} parent=11 // pred_fallthru
          _
        // Predicated region
        $region17: #{_output_cv_block_flat.1} parent=11 // pred_check
          %p150 = pneg %p85
        $region18: #{_output_cv_block_flat.1} parent=11 // pred_check_branch
          %152 = sbr.rel (%p150) target = $region20
        $region19: #{_output_cv_block_flat.1} parent=11 // pred_region
          %154 = vsyncadd [#allocation6], 0
          %s156 = sshll.u32 %s2, 4
          %s157 = int_to_ptr.hbm [resolvable:$true] %s156
          %s158 = sshll.u32 [#allocation5], 4
          %s159 = int_to_ptr.vmem [resolvable:$true] %s158
          %161 = dma.hbm_to_vmem [thread:$0]  %s157, 128, %s159, [#allocation6]
        $region20: #{_output_cv_block_flat.1} parent=11 // pred_fallthru
          _
        // Predicated region
        $region21: #{_output_cv_block_flat.1} parent=11 // pred_check
          %p162 = pneg %p106
        $region22: #{_output_cv_block_flat.1} parent=11 // pred_check_branch
          %164 = sbr.rel (%p162) target = $region24
        $region23: #{_output_cv_block_flat.1} parent=11 // pred_region
          _
        $region24: #{_output_cv_block_flat.1} parent=11 // pred_fallthru
          _
      $region12: #{_output_cv_block_flat.1} parent=5 // pred_fallthru
        _
      %p165 = scmp.lt.s32.totalorder %s17, 2
      // Predicated region
      $region25: #{_output_cv_block_flat.1} parent=5 // pred_check
        %p166 = pneg %p165
      $region26: #{_output_cv_block_flat.1} parent=5 // pred_check_branch
        %168 = sbr.rel (%p166) target = $region28
      $region27: #{_output_cv_block_flat.1} parent=5 // pred_region
        // Predicated region
        $region29: #{_output_cv_block_flat.1} parent=27 // pred_check
          %p169 = pneg %p37
        $region30: #{_output_cv_block_flat.1} parent=27 // pred_check_branch
          %171 = sbr.rel (%p169) target = $region32
        $region31: #{_output_cv_block_flat.1} parent=27 // pred_region
          %s172 = sand.u32 %s27, 1
          %s173 = scalar_lea.sflag [#allocation3], %s172
          %s174 = sand.u32 %s27, 1
          %s175 = smul.addr %s174, 32
          %s176 = scalar_lea.vmem [#allocation2], %s175
          %178 = vsyncadd %s173, 0
          %s179 = smul.addr %s17, 4
          %s180 = smul.addr %s179, 8
          %s181 = scalar_lea.hbm %s0, %s180
          %s182 = sshll.u32 %s181, 4
          %s183 = int_to_ptr.hbm [resolvable:$true] %s182
          %s184 = sshll.u32 %s176, 4
          %s185 = int_to_ptr.vmem [resolvable:$true] %s184
          %190 = dma.hbm_to_vmem [thread:$0]  %s183, 512, %s185, %s173, 256, 256, 16
        $region32: #{_output_cv_block_flat.1} parent=27 // pred_fallthru
          _
      $region28: #{_output_cv_block_flat.1} parent=5 // pred_fallthru
        _
      %p191 = scmp.le.s32.totalorder 1, %s17
      %p192 = scmp.lt.s32.totalorder %s17, 3
      %p193 = pnand %p191, %p192
      %p194 = pneg %p193
      // Predicated region
      $region33: #{_output_cv_block_flat.1} parent=5 // pred_check
        _
      $region34: #{_output_cv_block_flat.1} parent=5 // pred_check_branch
        %196 = sbr.rel (%p193) target = $region36
      $region35: #{_output_cv_block_flat.1} parent=5 // pred_region
        %s197 = ssub.s32 %s17, 1
        %s198 = sand.u32 %s30, 1
        %s199 = scalar_lea.sflag [#allocation3], %s198
        %s200 = sand.u32 %s30, 1
        %s201 = smul.addr %s200, 32
        %s202 = scalar_lea.vmem [#allocation2], %s201
        // Predicated region
        $region37: #{_output_cv_block_flat.1} parent=35 // pred_check
          %p203 = pneg %p43
        $region38: #{_output_cv_block_flat.1} parent=35 // pred_check_branch
          %205 = sbr.rel (%p203) target = $region40
        $region39: #{_output_cv_block_flat.1} parent=35 // pred_region
          %207 = dma.done %s199, 512
        $region40: #{_output_cv_block_flat.1} parent=35 // pred_fallthru
          _
        // Predicated region
        $region41: #{_output_cv_block_flat.1} parent=35 // pred_check
          %p208 = pneg %p85
        $region42: #{_output_cv_block_flat.1} parent=35 // pred_check_branch
          %210 = sbr.rel (%p208) target = $region44
        $region43: #{_output_cv_block_flat.1} parent=35 // pred_region
          %212 = dma.done [#allocation6], 128
        $region44: #{_output_cv_block_flat.1} parent=35 // pred_fallthru
          _
        %s213 = sand.u32 %s30, 1
        %s214 = scalar_lea.sflag [#allocation3], %s213
        %s215 = sand.u32 %s30, 1
        %s216 = smul.addr %s215, 32
        %s217 = scalar_lea.vmem [#allocation2], %s216
        %p218 = pneg %p43
        %p219 = pneg %p40
        %p220 = pneg %p64
        %p221 = pneg %p61
        %p222 = pneg %p85
        %p223 = pneg %p82
        %p224 = pneg %p106
        %p225 = pneg %p103
        %p226 = pneg %p132
        %p227 = pneg %p129
        %s228 = sand.u32 %s119, 1
        %s229 = scalar_lea.sflag [#allocation4], %s228
        %s230 = sand.u32 %s119, 1
        %s231 = smul.addr %s230, 16
        %s232 = scalar_lea.vmem [#allocation7], %s231
        %v234 = vlaneseq
        %v235 = vand.u32 %v234, 127
        %v236 = vadd.s32 %v235, 128
        %vm237 = vcmp.lt.s32.totalorder %v235, 0
        %v238 = vsub.s32 0, %v235
        %v239 = vsel %vm237, %v238, %v235
        %v240 = vshrl.u32 %v239, 4
        %v241 = vand.u32 %v239, 15
        %v242 = vsub.s32 0, %v241
        %v243 = vsel %vm237, %v242, %v241
        %vm244 = vcmp.lt.s32.totalorder %v236, 0
        %v245 = vsub.s32 0, %v236
        %v246 = vsel %vm244, %v245, %v236
        %v247 = vshrl.u32 %v246, 4
        %v248 = vand.u32 %v246, 15
        %v249 = vsub.s32 0, %v248
        %v250 = vsel %vm244, %v249, %v248
        %vm251 = vcmp.ne.s32.totalorder %v243, 0
        %vm252 = vcmp.ne.s32.totalorder %v250, 0
        %vm253 = vcmp.lt.s32.totalorder %v243, 0
        %vm254 = vcmp.lt.s32.totalorder %v250, 0
        %vm255 = vmand %vm253, %vm251
        %vm256 = vmand %vm254, %vm252
        %v257 = vadd.s32 %v243, 16
        %v258 = vadd.s32 %v250, 16
        %v259 = vsel %vm255, %v257, %v243
        %v260 = vsel %vm256, %v258, %v250
        %v261 = vld [vmem:[%s202] sm:$0xff]
        %v262 = vld [vmem:[%s202 + $0x8] sm:$0xff]
        %v263 = vld [vmem:[%s202 + $0x10] sm:$0xff]
        %v264 = vld [vmem:[%s202 + $0x18] sm:$0xff]
        %v265 = vld [vmem:[%s1] sm:$0xff]
        %v266 = vld [vmem:[%s1 + $0x8] sm:$0xff]
        %vm267 = vcmp.le.s32.totalorder %v259, 14
        %vm268 = vcmp.le.s32.totalorder %v260, 14
        %v269 = vsel %vm267, 1, 0
        %v270 = vsel %vm268, 1, 0
        %vm271 = vcmp.eq.s32.totalorder %v269, 1
        %vm272 = vcmp.eq.s32.totalorder %v270, 1
        %v273 = vsel %vm271, %v261, 0.0
        %v274 = vsel %vm272, %v262, 0.0
        %v275 = vsel %vm271, %v263, 0.0
        %v276 = vsel %vm272, %v264, 0.0
        %vm277 = vcmp.ge.s32.totalorder %v259, 1
        %vm278 = vcmp.ge.s32.totalorder %v260, 1
        %v279 = vsel %vm277, 1, 0
        %v280 = vsel %vm278, 1, 0
        %vm281 = vcmp.eq.s32.totalorder %v279, 1
        %vm282 = vcmp.eq.s32.totalorder %v280, 1
        %v283 = vsel %vm281, %v261, 0.0
        %v284 = vsel %vm282, %v262, 0.0
        %v285 = vsel %vm281, %v263, 0.0
        %v286 = vsel %vm282, %v264, 0.0
        %291 = vrot.lane.b32.xlu0 %v273, 17
        %v292 = vpop.permute.xlu0 %291
        %293 = vrot.lane.b32.xlu0 %v274, 17
        %v294 = vpop.permute.xlu0 %293
        %295 = vrot.lane.b32.xlu0 %v275, 17
        %v296 = vpop.permute.xlu0 %295
        %297 = vrot.lane.b32.xlu0 %v276, 17
        %v298 = vpop.permute.xlu0 %297
        %vm299 = vcmask 138240
        %v300 = vsel %vm299, %v292, %v294
        %v301 = vsel %vm299, %v296, %v298
        %v306 = vsel %vm299, 0.0, %v292
        %v307 = vsel %vm299, 0.0, %v296
        %v308 = vpack.c.bf16 %v300, %v306
        %v309 = vpack.c.bf16 %v301, %v307
        %314 = vrot.lane.b32.xlu0 %v261, 16
        %v315 = vpop.permute.xlu0 %314
        %316 = vrot.lane.b32.xlu0 %v262, 16
        %v317 = vpop.permute.xlu0 %316
        %318 = vrot.lane.b32.xlu0 %v263, 16
        %v319 = vpop.permute.xlu0 %318
        %320 = vrot.lane.b32.xlu0 %v264, 16
        %v321 = vpop.permute.xlu0 %320
        %vm322 = vcmask 130048
        %v323 = vsel %vm322, %v315, %v317
        %v324 = vsel %vm322, %v319, %v321
        %v329 = vsel %vm322, 0.0, %v315
        %v330 = vsel %vm322, 0.0, %v319
        %v331 = vpack.c.bf16 %v323, %v329
        %v332 = vpack.c.bf16 %v324, %v330
        %337 = vrot.lane.b32.xlu0 %v283, 15
        %v338 = vpop.permute.xlu0 %337
        %339 = vrot.lane.b32.xlu0 %v284, 15
        %v340 = vpop.permute.xlu0 %339
        %341 = vrot.lane.b32.xlu0 %v285, 15
        %v342 = vpop.permute.xlu0 %341
        %343 = vrot.lane.b32.xlu0 %v286, 15
        %v344 = vpop.permute.xlu0 %343
        %vm345 = vcmask 121856
        %v346 = vsel %vm345, %v338, %v340
        %v347 = vsel %vm345, %v342, %v344
        %v352 = vsel %vm345, 0.0, %v338
        %v353 = vsel %vm345, 0.0, %v342
        %v354 = vpack.c.bf16 %v346, %v352
        %v355 = vpack.c.bf16 %v347, %v353
        %356 = vrot.lane.b32.xlu0 %v273, 1
        %v357 = vpop.permute.xlu0 %356
        %358 = vrot.lane.b32.xlu0 %v274, 1
        %v359 = vpop.permute.xlu0 %358
        %360 = vrot.lane.b32.xlu0 %v275, 1
        %v361 = vpop.permute.xlu0 %360
        %362 = vrot.lane.b32.xlu0 %v276, 1
        %v363 = vpop.permute.xlu0 %362
        %vm364 = vcmask 7168
        %v365 = vsel %vm364, %v357, %v359
        %v366 = vsel %vm364, %v361, %v363
        %v371 = vsel %vm364, 0.0, %v357
        %v372 = vsel %vm364, 0.0, %v361
        %v373 = vpack.c.bf16 %v365, %v371
        %v374 = vpack.c.bf16 %v366, %v372
        %v375 = vpack.c.bf16 %v262, %v261
        %v376 = vpack.c.bf16 %v264, %v263
        %377 = vrot.lane.b32.xlu0 %v283, 127
        %v378 = vpop.permute.xlu0 %377
        %379 = vrot.lane.b32.xlu0 %v284, 127
        %v380 = vpop.permute.xlu0 %379
        %381 = vrot.lane.b32.xlu0 %v285, 127
        %v382 = vpop.permute.xlu0 %381
        %383 = vrot.lane.b32.xlu0 %v286, 127
        %v384 = vpop.permute.xlu0 %383
        %vm385 = vcmask 1039360
        %v386 = vsel %vm385, %v378, %v380
        %v387 = vsel %vm385, %v382, %v384
        %v392 = vsel %vm385, %v380, 0.0
        %v393 = vsel %vm385, %v384, 0.0
        %v394 = vpack.c.bf16 %v392, %v386
        %v395 = vpack.c.bf16 %v393, %v387
        %396 = vrot.lane.b32.xlu0 %v273, 113
        %v397 = vpop.permute.xlu0 %396
        %398 = vrot.lane.b32.xlu0 %v274, 113
        %v399 = vpop.permute.xlu0 %398
        %400 = vrot.lane.b32.xlu0 %v275, 113
        %v401 = vpop.permute.xlu0 %400
        %402 = vrot.lane.b32.xlu0 %v276, 113
        %v403 = vpop.permute.xlu0 %402
        %vm404 = vcmask 924672
        %v405 = vsel %vm404, %v397, %v399
        %v406 = vsel %vm404, %v401, %v403
        %v411 = vsel %vm404, %v399, 0.0
        %v412 = vsel %vm404, %v403, 0.0
        %v413 = vpack.c.bf16 %v411, %v405
        %v414 = vpack.c.bf16 %v412, %v406
        %415 = vrot.lane.b32.xlu0 %v261, 112
        %v416 = vpop.permute.xlu0 %415
        %417 = vrot.lane.b32.xlu0 %v262, 112
        %v418 = vpop.permute.xlu0 %417
        %419 = vrot.lane.b32.xlu0 %v263, 112
        %v420 = vpop.permute.xlu0 %419
        %421 = vrot.lane.b32.xlu0 %v264, 112
        %v422 = vpop.permute.xlu0 %421
        %vm423 = vcmask 916480
        %v424 = vsel %vm423, %v416, %v418
        %v425 = vsel %vm423, %v420, %v422
        %v430 = vsel %vm423, %v418, 0.0
        %v431 = vsel %vm423, %v422, 0.0
        %v432 = vpack.c.bf16 %v430, %v424
        %v433 = vpack.c.bf16 %v431, %v425
        %434 = vrot.lane.b32.xlu0 %v283, 111
        %v435 = vpop.permute.xlu0 %434
        %436 = vrot.lane.b32.xlu0 %v284, 111
        %v437 = vpop.permute.xlu0 %436
        %438 = vrot.lane.b32.xlu0 %v285, 111
        %v439 = vpop.permute.xlu0 %438
        %440 = vrot.lane.b32.xlu0 %v286, 111
        %v441 = vpop.permute.xlu0 %440
        %vm442 = vcmask 908288
        %v443 = vsel %vm442, %v435, %v437
        %v444 = vsel %vm442, %v439, %v441
        %v449 = vsel %vm442, %v437, 0.0
        %v450 = vsel %vm442, %v441, 0.0
        %v451 = vpack.c.bf16 %v449, %v443
        %v452 = vpack.c.bf16 %v450, %v444
        %v455 = vunpack.c.l.b16 %v308
        %v456 = vunpack.c.h.b16 %v308
        %v457 = vunpack.c.l.b16 %v309
        %v458 = vunpack.c.h.b16 %v309
        %v459 = vpack.c.b16 %v457, %v455
        %v460 = vpack.c.b16 %v458, %v456
        %v465 = vunpack.c.l.b16 %v331
        %v466 = vunpack.c.h.b16 %v331
        %v467 = vunpack.c.l.b16 %v332
        %v468 = vunpack.c.h.b16 %v332
        %v469 = vpack.c.b16 %v467, %v465
        %v470 = vpack.c.b16 %v468, %v466
        %v475 = vunpack.c.l.b16 %v354
        %v476 = vunpack.c.h.b16 %v354
        %v477 = vunpack.c.l.b16 %v355
        %v478 = vunpack.c.h.b16 %v355
        %v479 = vpack.c.b16 %v477, %v475
        %v480 = vpack.c.b16 %v478, %v476
        %v485 = vunpack.c.l.b16 %v373
        %v486 = vunpack.c.h.b16 %v373
        %v487 = vunpack.c.l.b16 %v374
        %v488 = vunpack.c.h.b16 %v374
        %v489 = vpack.c.b16 %v487, %v485
        %v490 = vpack.c.b16 %v488, %v486
        %v495 = vunpack.c.l.b16 %v375
        %v496 = vunpack.c.h.b16 %v375
        %v497 = vunpack.c.l.b16 %v376
        %v498 = vunpack.c.h.b16 %v376
        %v499 = vpack.c.b16 %v497, %v495
        %v500 = vpack.c.b16 %v498, %v496
        %v505 = vunpack.c.l.b16 %v394
        %v506 = vunpack.c.h.b16 %v394
        %v507 = vunpack.c.l.b16 %v395
        %v508 = vunpack.c.h.b16 %v395
        %v509 = vpack.c.b16 %v507, %v505
        %v510 = vpack.c.b16 %v508, %v506
        %v515 = vunpack.c.l.b16 %v413
        %v516 = vunpack.c.h.b16 %v413
        %v517 = vunpack.c.l.b16 %v414
        %v518 = vunpack.c.h.b16 %v414
        %v519 = vpack.c.b16 %v517, %v515
        %v520 = vpack.c.b16 %v518, %v516
        %v525 = vunpack.c.l.b16 %v432
        %v526 = vunpack.c.h.b16 %v432
        %v527 = vunpack.c.l.b16 %v433
        %v528 = vunpack.c.h.b16 %v433
        %v529 = vpack.c.b16 %v527, %v525
        %v530 = vpack.c.b16 %v528, %v526
        %v535 = vunpack.c.l.b16 %v451
        %v536 = vunpack.c.h.b16 %v451
        %v537 = vunpack.c.l.b16 %v452
        %v538 = vunpack.c.h.b16 %v452
        %v539 = vpack.c.b16 %v537, %v535
        %v540 = vpack.c.b16 %v538, %v536
        %v543 = vld [vmem:[%s3] sm:$0xff]
        %v544 = vld [vmem:[%s3 + $0x8] sm:$0xff]
        %546 = vset.pattern.permute.xlu0 0
        %547 = vperm.xlu0 %546, %v543
        %v548 = vpop.permute.xlu0 %547
        %551 = vset.pattern.permute.xlu0 0
        %552 = vperm.xlu0 %551, %v544
        %v553 = vpop.permute.xlu0 %552
        %v557 = vunpack.c.l.b16 %v265
        %v558 = vunpack.c.h.b16 %v265
        %v559 = vunpack.c.l.b16 %v266
        %v560 = vunpack.c.h.b16 %v266
        %v561 = vpack.c.b16 %v559, %v557
        %v562 = vpack.c.b16 %v560, %v558
        %v565 = vsel %vm322, %v562, 0
        %567 = vmatpush.bf16.msra.mxu0 %v529
        %568 = vmatpush.bf16.msra.mxu0 %v519
        %569 = vmatpush.bf16.msra.mxu0 %v509
        %570 = vmatpush.bf16.msra.mxu0 %v499
        %571 = vmatpush.bf16.msra.mxu0 %v489
        %572 = vmatpush.bf16.msra.mxu0 %v479
        %573 = vmatpush.bf16.msra.mxu0 %v469
        %574 = vmatpush.bf16.msra.mxu0 %v459
        %575 = vmatmul.bf16.gmra.mxu0 %v561
        %v576 = vpop.f32.mrf.mxu0
        %v577 = vadd.f32 %v548, %v576
        %v578 = vpop.f32.mrf.mxu0
        %v579 = vadd.f32 %v553, %v578
        %580 = vdwg.mxu0
        %581 = vmatpush.bf16.msra.mxu0 0
        %582 = vmatpush.bf16.msra.mxu0 0
        %583 = vmatpush.bf16.msra.mxu0 0
        %584 = vmatpush.bf16.msra.mxu0 0
        %585 = vmatpush.bf16.msra.mxu0 0
        %586 = vmatpush.bf16.msra.mxu0 0
        %587 = vmatpush.bf16.msra.mxu0 0
        %588 = vmatpush.bf16.msra.mxu0 %v539
        %589 = vmatmul.bf16.gmra.mxu0 %v565
        %v590 = vpop.f32.mrf.mxu0
        %v591 = vadd.f32 %v577, %v590
        %v592 = vpop.f32.mrf.mxu0
        %v593 = vadd.f32 %v579, %v592
        %594 = vdwg.mxu0
        %595 = vmatpush.bf16.msra.mxu0 %v530
        %596 = vmatpush.bf16.msra.mxu0 %v520
        %597 = vmatpush.bf16.msra.mxu0 %v510
        %598 = vmatpush.bf16.msra.mxu0 %v500
        %599 = vmatpush.bf16.msra.mxu0 %v490
        %600 = vmatpush.bf16.msra.mxu0 %v480
        %601 = vmatpush.bf16.msra.mxu0 %v470
        %602 = vmatpush.bf16.msra.mxu0 %v460
        %603 = vmatmul.bf16.gmra.mxu0 %v561
        %v604 = vpop.f32.mrf.mxu0
        %v605 = vadd.f32 %v548, %v604
        %v606 = vpop.f32.mrf.mxu0
        %v607 = vadd.f32 %v553, %v606
        %608 = vdwg.mxu0
        %609 = vmatpush.bf16.msra.mxu0 0
        %610 = vmatpush.bf16.msra.mxu0 0
        %611 = vmatpush.bf16.msra.mxu0 0
        %612 = vmatpush.bf16.msra.mxu0 0
        %613 = vmatpush.bf16.msra.mxu0 0
        %614 = vmatpush.bf16.msra.mxu0 0
        %615 = vmatpush.bf16.msra.mxu0 0
        %616 = vmatpush.bf16.msra.mxu0 %v540
        %617 = vmatmul.bf16.gmra.mxu0 %v565
        %v618 = vpop.f32.mrf.mxu0
        %v619 = vadd.f32 %v605, %v618
        %v620 = vpop.f32.mrf.mxu0
        %v621 = vadd.f32 %v607, %v620
        %622 = vdwg.mxu0
        %v623 = vmax.f32 %v591, 0.0
        %v624 = vmax.f32 %v619, 0.0
        %v625 = vmax.f32 %v593, 0.0
        %v626 = vmax.f32 %v621, 0.0
        %v627 = vld [vmem:[#allocation5] sm:$0xff]
        %v628 = vsel %vm271, %v623, 0.0
        %v629 = vsel %vm272, %v624, 0.0
        %v630 = vsel %vm271, %v625, 0.0
        %v631 = vsel %vm272, %v626, 0.0
        %v632 = vsel %vm281, %v623, 0.0
        %v633 = vsel %vm282, %v624, 0.0
        %v634 = vsel %vm281, %v625, 0.0
        %v635 = vsel %vm282, %v626, 0.0
        %640 = vrot.lane.b32.xlu0 %v628, 17
        %v641 = vpop.permute.xlu0 %640
        %642 = vrot.lane.b32.xlu0 %v629, 17
        %v643 = vpop.permute.xlu0 %642
        %644 = vrot.lane.b32.xlu0 %v630, 17
        %v645 = vpop.permute.xlu0 %644
        %646 = vrot.lane.b32.xlu0 %v631, 17
        %v647 = vpop.permute.xlu0 %646
        %v648 = vsel %vm299, %v641, %v643
        %v649 = vsel %vm299, %v645, %v647
        %v654 = vsel %vm299, 0.0, %v641
        %v655 = vsel %vm299, 0.0, %v645
        %v656 = vpack.c.bf16 %v648, %v654
        %v657 = vpack.c.bf16 %v649, %v655
        %662 = vrot.lane.b32.xlu0 %v623, 16
        %v663 = vpop.permute.xlu0 %662
        %664 = vrot.lane.b32.xlu0 %v624, 16
        %v665 = vpop.permute.xlu0 %664
        %666 = vrot.lane.b32.xlu0 %v625, 16
        %v667 = vpop.permute.xlu0 %666
        %668 = vrot.lane.b32.xlu0 %v626, 16
        %v669 = vpop.permute.xlu0 %668
        %v670 = vsel %vm322, %v663, %v665
        %v671 = vsel %vm322, %v667, %v669
        %v676 = vsel %vm322, 0.0, %v663
        %v677 = vsel %vm322, 0.0, %v667
        %v678 = vpack.c.bf16 %v670, %v676
        %v679 = vpack.c.bf16 %v671, %v677
        %684 = vrot.lane.b32.xlu0 %v632, 15
        %v685 = vpop.permute.xlu0 %684
        %686 = vrot.lane.b32.xlu0 %v633, 15
        %v687 = vpop.permute.xlu0 %686
        %688 = vrot.lane.b32.xlu0 %v634, 15
        %v689 = vpop.permute.xlu0 %688
        %690 = vrot.lane.b32.xlu0 %v635, 15
        %v691 = vpop.permute.xlu0 %690
        %v692 = vsel %vm345, %v685, %v687
        %v693 = vsel %vm345, %v689, %v691
        %v698 = vsel %vm345, 0.0, %v685
        %v699 = vsel %vm345, 0.0, %v689
        %v700 = vpack.c.bf16 %v692, %v698
        %v701 = vpack.c.bf16 %v693, %v699
        %702 = vrot.lane.b32.xlu0 %v628, 1
        %v703 = vpop.permute.xlu0 %702
        %704 = vrot.lane.b32.xlu0 %v629, 1
        %v705 = vpop.permute.xlu0 %704
        %706 = vrot.lane.b32.xlu0 %v630, 1
        %v707 = vpop.permute.xlu0 %706
        %708 = vrot.lane.b32.xlu0 %v631, 1
        %v709 = vpop.permute.xlu0 %708
        %v710 = vsel %vm364, %v703, %v705
        %v711 = vsel %vm364, %v707, %v709
        %v716 = vsel %vm364, 0.0, %v703
        %v717 = vsel %vm364, 0.0, %v707
        %v718 = vpack.c.bf16 %v710, %v716
        %v719 = vpack.c.bf16 %v711, %v717
        %v720 = vpack.c.bf16 %v624, %v623
        %v721 = vpack.c.bf16 %v626, %v625
        %722 = vrot.lane.b32.xlu0 %v632, 127
        %v723 = vpop.permute.xlu0 %722
        %724 = vrot.lane.b32.xlu0 %v633, 127
        %v725 = vpop.permute.xlu0 %724
        %726 = vrot.lane.b32.xlu0 %v634, 127
        %v727 = vpop.permute.xlu0 %726
        %728 = vrot.lane.b32.xlu0 %v635, 127
        %v729 = vpop.permute.xlu0 %728
        %v730 = vsel %vm385, %v723, %v725
        %v731 = vsel %vm385, %v727, %v729
        %v736 = vsel %vm385, %v725, 0.0
        %v737 = vsel %vm385, %v729, 0.0
        %v738 = vpack.c.bf16 %v736, %v730
        %v739 = vpack.c.bf16 %v737, %v731
        %740 = vrot.lane.b32.xlu0 %v628, 113
        %v741 = vpop.permute.xlu0 %740
        %742 = vrot.lane.b32.xlu0 %v629, 113
        %v743 = vpop.permute.xlu0 %742
        %744 = vrot.lane.b32.xlu0 %v630, 113
        %v745 = vpop.permute.xlu0 %744
        %746 = vrot.lane.b32.xlu0 %v631, 113
        %v747 = vpop.permute.xlu0 %746
        %v748 = vsel %vm404, %v741, %v743
        %v749 = vsel %vm404, %v745, %v747
        %v754 = vsel %vm404, %v743, 0.0
        %v755 = vsel %vm404, %v747, 0.0
        %v756 = vpack.c.bf16 %v754, %v748
        %v757 = vpack.c.bf16 %v755, %v749
        %758 = vrot.lane.b32.xlu0 %v623, 112
        %v759 = vpop.permute.xlu0 %758
        %760 = vrot.lane.b32.xlu0 %v624, 112
        %v761 = vpop.permute.xlu0 %760
        %762 = vrot.lane.b32.xlu0 %v625, 112
        %v763 = vpop.permute.xlu0 %762
        %764 = vrot.lane.b32.xlu0 %v626, 112
        %v765 = vpop.permute.xlu0 %764
        %v766 = vsel %vm423, %v759, %v761
        %v767 = vsel %vm423, %v763, %v765
        %v772 = vsel %vm423, %v761, 0.0
        %v773 = vsel %vm423, %v765, 0.0
        %v774 = vpack.c.bf16 %v772, %v766
        %v775 = vpack.c.bf16 %v773, %v767
        %776 = vrot.lane.b32.xlu0 %v632, 111
        %v777 = vpop.permute.xlu0 %776
        %778 = vrot.lane.b32.xlu0 %v633, 111
        %v779 = vpop.permute.xlu0 %778
        %780 = vrot.lane.b32.xlu0 %v634, 111
        %v781 = vpop.permute.xlu0 %780
        %782 = vrot.lane.b32.xlu0 %v635, 111
        %v783 = vpop.permute.xlu0 %782
        %v784 = vsel %vm442, %v777, %v779
        %v785 = vsel %vm442, %v781, %v783
        %v790 = vsel %vm442, %v779, 0.0
        %v791 = vsel %vm442, %v783, 0.0
        %v792 = vpack.c.bf16 %v790, %v784
        %v793 = vpack.c.bf16 %v791, %v785
        %v796 = vunpack.c.l.b16 %v656
        %v797 = vunpack.c.h.b16 %v656
        %v798 = vunpack.c.l.b16 %v657
        %v799 = vunpack.c.h.b16 %v657
        %v800 = vpack.c.b16 %v798, %v796
        %v801 = vpack.c.b16 %v799, %v797
        %v806 = vunpack.c.l.b16 %v678
        %v807 = vunpack.c.h.b16 %v678
        %v808 = vunpack.c.l.b16 %v679
        %v809 = vunpack.c.h.b16 %v679
        %v810 = vpack.c.b16 %v808, %v806
        %v811 = vpack.c.b16 %v809, %v807
        %v816 = vunpack.c.l.b16 %v700
        %v817 = vunpack.c.h.b16 %v700
        %v818 = vunpack.c.l.b16 %v701
        %v819 = vunpack.c.h.b16 %v701
        %v820 = vpack.c.b16 %v818, %v816
        %v821 = vpack.c.b16 %v819, %v817
        %v826 = vunpack.c.l.b16 %v718
        %v827 = vunpack.c.h.b16 %v718
        %v828 = vunpack.c.l.b16 %v719
        %v829 = vunpack.c.h.b16 %v719
        %v830 = vpack.c.b16 %v828, %v826
        %v831 = vpack.c.b16 %v829, %v827
        %v836 = vunpack.c.l.b16 %v720
        %v837 = vunpack.c.h.b16 %v720
        %v838 = vunpack.c.l.b16 %v721
        %v839 = vunpack.c.h.b16 %v721
        %v840 = vpack.c.b16 %v838, %v836
        %v841 = vpack.c.b16 %v839, %v837
        %v846 = vunpack.c.l.b16 %v738
        %v847 = vunpack.c.h.b16 %v738
        %v848 = vunpack.c.l.b16 %v739
        %v849 = vunpack.c.h.b16 %v739
        %v850 = vpack.c.b16 %v848, %v846
        %v851 = vpack.c.b16 %v849, %v847
        %v856 = vunpack.c.l.b16 %v756
        %v857 = vunpack.c.h.b16 %v756
        %v858 = vunpack.c.l.b16 %v757
        %v859 = vunpack.c.h.b16 %v757
        %v860 = vpack.c.b16 %v858, %v856
        %v861 = vpack.c.b16 %v859, %v857
        %v866 = vunpack.c.l.b16 %v774
        %v867 = vunpack.c.h.b16 %v774
        %v868 = vunpack.c.l.b16 %v775
        %v869 = vunpack.c.h.b16 %v775
        %v870 = vpack.c.b16 %v868, %v866
        %v871 = vpack.c.b16 %v869, %v867
        %v876 = vunpack.c.l.b16 %v792
        %v877 = vunpack.c.h.b16 %v792
        %v878 = vunpack.c.l.b16 %v793
        %v879 = vunpack.c.h.b16 %v793
        %v880 = vpack.c.b16 %v878, %v876
        %v881 = vpack.c.b16 %v879, %v877
        %v885 = vunpack.c.l.b16 %v627
        %v886 = vunpack.c.h.b16 %v627
        %v887 = vpack.c.b16 %v885, %v885
        %v888 = vpack.c.b16 %v886, %v886
        %v891 = vsel %vm322, %v888, 0
        %893 = vmatpush.bf16.msra.mxu0 %v870
        %894 = vmatpush.bf16.msra.mxu0 %v860
        %895 = vmatpush.bf16.msra.mxu0 %v850
        %896 = vmatpush.bf16.msra.mxu0 %v840
        %897 = vmatpush.bf16.msra.mxu0 %v830
        %898 = vmatpush.bf16.msra.mxu0 %v820
        %899 = vmatpush.bf16.msra.mxu0 %v810
        %900 = vmatpush.bf16.msra.mxu0 %v800
        %901 = vmatmul.bf16.gmra.mxu0 %v887
        %v902 = vpop.f32.mrf.mxu0
        %v903 = vadd.f32 0.0, %v902
        %v904 = vpop.f32.mrf.mxu0
        %905 = vdwg.mxu0
        %906 = vmatpush.bf16.msra.mxu0 0
        %907 = vmatpush.bf16.msra.mxu0 0
        %908 = vmatpush.bf16.msra.mxu0 0
        %909 = vmatpush.bf16.msra.mxu0 0
        %910 = vmatpush.bf16.msra.mxu0 0
        %911 = vmatpush.bf16.msra.mxu0 0
        %912 = vmatpush.bf16.msra.mxu0 0
        %913 = vmatpush.bf16.msra.mxu0 %v880
        %914 = vmatmul.bf16.gmra.mxu0 %v891
        %v915 = vpop.f32.mrf.mxu0
        %v916 = vadd.f32 %v903, %v915
        %v917 = vpop.f32.mrf.mxu0
        %918 = vdwg.mxu0
        %919 = vmatpush.bf16.msra.mxu0 %v871
        %920 = vmatpush.bf16.msra.mxu0 %v861
        %921 = vmatpush.bf16.msra.mxu0 %v851
        %922 = vmatpush.bf16.msra.mxu0 %v841
        %923 = vmatpush.bf16.msra.mxu0 %v831
        %924 = vmatpush.bf16.msra.mxu0 %v821
        %925 = vmatpush.bf16.msra.mxu0 %v811
        %926 = vmatpush.bf16.msra.mxu0 %v801
        %927 = vmatmul.bf16.gmra.mxu0 %v887
        %v928 = vpop.f32.mrf.mxu0
        %v929 = vadd.f32 0.0, %v928
        %v930 = vpop.f32.mrf.mxu0
        %931 = vdwg.mxu0
        %932 = vmatpush.bf16.msra.mxu0 0
        %933 = vmatpush.bf16.msra.mxu0 0
        %934 = vmatpush.bf16.msra.mxu0 0
        %935 = vmatpush.bf16.msra.mxu0 0
        %936 = vmatpush.bf16.msra.mxu0 0
        %937 = vmatpush.bf16.msra.mxu0 0
        %938 = vmatpush.bf16.msra.mxu0 0
        %939 = vmatpush.bf16.msra.mxu0 %v881
        %940 = vmatmul.bf16.gmra.mxu0 %v891
        %v941 = vpop.f32.mrf.mxu0
        %v942 = vadd.f32 %v929, %v941
        %v943 = vpop.f32.mrf.mxu0
        %944 = vdwg.mxu0
        %945 = vst [vmem:[%s232] sm:$0xff] %v916
        %946 = vst [vmem:[%s232 + $0x8] sm:$0xff] %v942
        %s947 = sand.u32 %s119, 1
        %s948 = scalar_lea.sflag [#allocation4], %s947
        %s949 = sand.u32 %s119, 1
        %s950 = smul.addr %s949, 16
        %s951 = scalar_lea.vmem [#allocation7], %s950
        // Predicated region
        $region45: #{_output_cv_block_flat.1} parent=35 // pred_check
          %p952 = pneg %p129
        $region46: #{_output_cv_block_flat.1} parent=35 // pred_check_branch
          %954 = sbr.rel (%p952) target = $region48
        $region47: #{_output_cv_block_flat.1} parent=35 // pred_region
          %956 = vsyncadd %s948, 0
          %s957 = smul.addr %s22, 2
          %s958 = smul.addr %s957, 8
          %s959 = scalar_lea.hbm %s4, %s958
          %s961 = sshll.u32 %s951, 4
          %s962 = int_to_ptr.vmem [resolvable:$true] %s961
          %s963 = sshll.u32 %s959, 4
          %s964 = int_to_ptr.hbm [resolvable:$true] %s963
          %966 = dma.vmem_to_hbm [thread:$0]  %s962, 256, %s964, %s948
        $region48: #{_output_cv_block_flat.1} parent=35 // pred_fallthru
          _
      $region36: #{_output_cv_block_flat.1} parent=5 // pred_fallthru
        _
      %p967 = scmp.le.s32.totalorder 2, %s17
      // Predicated region
      $region49: #{_output_cv_block_flat.1} parent=5 // pred_check
        %p968 = pneg %p967
      $region50: #{_output_cv_block_flat.1} parent=5 // pred_check_branch
        %970 = sbr.rel (%p968) target = $region52
      $region51: #{_output_cv_block_flat.1} parent=5 // pred_region
        %s971 = ssub.s32 %s17, 2
        // Predicated region
        $region53: #{_output_cv_block_flat.1} parent=51 // pred_check
          %p972 = pneg %p135
        $region54: #{_output_cv_block_flat.1} parent=51 // pred_check_branch
          %974 = sbr.rel (%p972) target = $region56
        $region55: #{_output_cv_block_flat.1} parent=51 // pred_region
          %s975 = sand.u32 %s120, 1
          %s976 = scalar_lea.sflag [#allocation4], %s975
          %s977 = sand.u32 %s120, 1
          %s978 = smul.addr %s977, 16
          %s979 = scalar_lea.vmem [#allocation7], %s978
          %981 = dma.done %s976, 256
        $region56: #{_output_cv_block_flat.1} parent=51 // pred_fallthru
          _
      $region52: #{_output_cv_block_flat.1} parent=5 // pred_fallthru
        _
    $region6: #{_output_cv_block_flat.1} parent=1 // loop_footer
      %s21 = sadd.s32 1, %s17
    $region7: #{_output_cv_block_flat.1} parent=1 // loop_footer_branch
      %16 = sbr.rel target = $region3
    $region8: #{_output_cv_block_flat.1} parent=1 // loop_exit
      _
    %982 = vsyncpa [#allocation3], 1
    %s983 = scalar_lea.sflag [#allocation3], 1
    %984 = vsyncpa %s983, 1
    %985 = vsyncpa [#allocation6], 1
    %986 = vsyncpa [#allocation4], 1
    %s987 = scalar_lea.sflag [#allocation4], 1
    %988 = vsyncpa %s987, 1

</llo_original>
